<compile_context>
chip_gen: v5e
topology: v5e:2x2
jax: 0.10.0
libtpu: 0.0.40
codegen_flags: <defaults>
</compile_context>

<pallas_src>
import math

import jax
import jax.numpy as jnp
import numpy as np
from jax.experimental import pallas as pl
from jax.experimental.pallas import tpu as pltpu

_LANE = 128
_SUBLANE = 8


def _pad_up(x, m):
    return ((x + m - 1) // m) * m


# ----------------------------------------------------------------------------
# Fused forward kernels (whole forward pass in a single kernel body)
# ----------------------------------------------------------------------------
def _make_mlp_kernel(n_layers):
    """Linear(+ReLU) x (n_layers-1) followed by a Linear producing logits."""

    def kernel(*refs):
        x_ref = refs[0]
        out_ref = refs[-1]
        act = x_ref[...]
        for li in range(n_layers):
            w = refs[1 + 2 * li][...]
            b = refs[2 + 2 * li][...]
            y = jnp.dot(act, w, preferred_element_type=jnp.float32) + b
            if li < n_layers - 1:
                y = jnp.maximum(y, 0.0)
            act = y
        out_ref[...] = act.astype(out_ref.dtype)

    return kernel


def _make_rnn_kernel(n_before, n_after, hp):
    """before-RNN Linears(+ReLU) -> GRUCell -> after-RNN Linears, fully fused."""

    def kernel(*refs):
        idx = 0
        x_ref = refs[idx]; idx += 1
        h_ref = refs[idx]; idx += 1
        before = []
        for _ in range(n_before):
            before.append((refs[idx], refs[idx + 1])); idx += 2
        wih_ref = refs[idx]
        whh_ref = refs[idx + 1]
        bih_ref = refs[idx + 2]
        bhh_ref = refs[idx + 3]
        idx += 4
        after = []
        for _ in range(n_after):
            after.append((refs[idx], refs[idx + 1])); idx += 2
        logits_ref = refs[idx]
        newh_ref = refs[idx + 1]

        # before-RNN MLP (ReLU on every layer)
        act = x_ref[...]
        for w_ref, b_ref in before:
            act = jnp.maximum(
                jnp.dot(act, w_ref[...], preferred_element_type=jnp.float32)
                + b_ref[...],
                0.0,
            )

        # GRU cell, PyTorch gate order [r, z, n].  H is padded to `hp` (=128k)
        # so each gate lives on its own lane-tile and these slices are
        # tile-aligned (cheap, no XLU work).
        h = h_ref[...]
        gi = jnp.dot(act, wih_ref[...], preferred_element_type=jnp.float32) + bih_ref[...]
        gh = jnp.dot(h, whh_ref[...], preferred_element_type=jnp.float32) + bhh_ref[...]
        i_r, i_z, i_n = gi[:, 0:hp], gi[:, hp:2 * hp], gi[:, 2 * hp:3 * hp]
        h_r, h_z, h_n = gh[:, 0:hp], gh[:, hp:2 * hp], gh[:, 2 * hp:3 * hp]
        r = jax.nn.sigmoid(i_r + h_r)
        z = jax.nn.sigmoid(i_z + h_z)
        n = jnp.tanh(i_n + r * h_n)
        h_new = (1.0 - z) * n + z * h
        newh_ref[...] = h_new.astype(newh_ref.dtype)

        # after-RNN MLP (ReLU on every layer except the last)
        act = h_new
        for li, (w_ref, b_ref) in enumerate(after):
            y = jnp.dot(act, w_ref[...], preferred_element_type=jnp.float32) + b_ref[...]
            if li < n_after - 1:
                y = jnp.maximum(y, 0.0)
            act = y
        logits_ref[...] = act.astype(logits_ref.dtype)

    return kernel


# ----------------------------------------------------------------------------
# Parameter initialization (pre-padded to lane-dense (…,128) layouts)
# ----------------------------------------------------------------------------
def _init_linear_padded(key, din, dout):
    k1, k2 = jax.random.split(key)
    bound = 1.0 / math.sqrt(din)
    w = jax.random.uniform(k1, (din, dout), jnp.float32, -bound, bound)
    b = jax.random.uniform(k2, (dout,), jnp.float32, -bound, bound)
    wp = jnp.zeros((_pad_up(din, _LANE), _pad_up(dout, _LANE)), jnp.float32)
    wp = wp.at[:din, :dout].set(w)
    bp = jnp.zeros((1, _pad_up(dout, _LANE)), jnp.float32).at[0, :dout].set(b)
    return wp, bp


def _init_gru_padded(key, din, hidden):
    hp = _pad_up(hidden, _LANE)
    dp = _pad_up(din, _LANE)
    k1, k2, k3, k4 = jax.random.split(key, 4)
    bound = 1.0 / math.sqrt(hidden)
    w_ih = jax.random.uniform(k1, (din, 3 * hidden), jnp.float32, -bound, bound)
    w_hh = jax.random.uniform(k2, (hidden, 3 * hidden), jnp.float32, -bound, bound)
    b_ih = jax.random.uniform(k3, (3 * hidden,), jnp.float32, -bound, bound)
    b_hh = jax.random.uniform(k4, (3 * hidden,), jnp.float32, -bound, bound)

    wih_p = jnp.zeros((dp, 3 * hp), jnp.float32)
    whh_p = jnp.zeros((hp, 3 * hp), jnp.float32)
    bih_p = jnp.zeros((1, 3 * hp), jnp.float32)
    bhh_p = jnp.zeros((1, 3 * hp), jnp.float32)
    for g in range(3):  # gate order [r, z, n]; each gate gets its own lane-tile
        wih_p = wih_p.at[:din, g * hp:g * hp + hidden].set(w_ih[:, g * hidden:(g + 1) * hidden])
        whh_p = whh_p.at[:hidden, g * hp:g * hp + hidden].set(w_hh[:, g * hidden:(g + 1) * hidden])
        bih_p = bih_p.at[0, g * hp:g * hp + hidden].set(b_ih[g * hidden:(g + 1) * hidden])
        bhh_p = bhh_p.at[0, g * hp:g * hp + hidden].set(b_hh[g * hidden:(g + 1) * hidden])
    return wih_p, whh_p, bih_p, bhh_p


# ----------------------------------------------------------------------------
# Actor (JAX/Pallas port)
# ----------------------------------------------------------------------------
class Actor:
    def __init__(self, before_rnn_layers, after_rnn_layers, rnn_hidden_dim=0,
                 dropout_p=0, key=None):
        del dropout_p  # unused in the reference forward pass (API parity only)
        if key is None:
            key = jax.random.PRNGKey(0)
        self.before_rnn_layers = list(before_rnn_layers)
        self.after_rnn_layers = list(after_rnn_layers)
        self.fc_layers = self.before_rnn_layers + self.after_rnn_layers
        self.rnn_hidden_dim = rnn_hidden_dim

        params = []
        if rnn_hidden_dim == 0:
            self._n_layers = len(self.fc_layers) - 1
            for din, dout in zip(self.fc_layers, self.fc_layers[1:]):
                key, sub = jax.random.split(key)
                params.extend(_init_linear_padded(sub, din, dout))
            self._out_dim = self.fc_layers[-1]
        else:
            self._n_before = len(self.before_rnn_layers) - 1
            for din, dout in zip(self.before_rnn_layers, self.before_rnn_layers[1:]):
                key, sub = jax.random.split(key)
                params.extend(_init_linear_padded(sub, din, dout))
            key, sub = jax.random.split(key)
            params.extend(_init_gru_padded(sub, self.before_rnn_layers[-1], rnn_hidden_dim))
            after = [rnn_hidden_dim] + self.after_rnn_layers
            self._n_after = len(after) - 1
            for din, dout in zip(after, after[1:]):
                key, sub = jax.random.split(key)
                params.extend(_init_linear_padded(sub, din, dout))
            self._out_dim = after[-1]
            self._hp = _pad_up(rnn_hidden_dim, _LANE)
        self.params = tuple(params)

        # Jitted, fully-fused forward paths (one pallas_call each).
        self._mlp_fwd = jax.jit(self._mlp_impl)
        self._rnn_fwd = jax.jit(self._rnn_impl)

    # -- pure-MLP path ------------------------------------------------------
    def _mlp_impl(self, params, x):
        b, d0 = x.shape
        bp = _pad_up(b, _SUBLANE)
        d0p = _pad_up(d0, _LANE)
        xp = jnp.pad(x.astype(jnp.float32), ((0, bp - b), (0, d0p - d0)))
        out_p = _pad_up(self._out_dim, _LANE)
        vmem = pl.BlockSpec(memory_space=pltpu.MemorySpace.VMEM)
        out = pl.pallas_call(
            _make_mlp_kernel(self._n_layers),
            out_shape=jax.ShapeDtypeStruct((bp, out_p), jnp.float32),
            in_specs=[vmem] * (1 + len(params)),
            out_specs=vmem,
        )(xp, *params)
        return out[:b, :self._out_dim]

    # -- RNN path ------------------------------------------------------------
    def _rnn_impl(self, params, x, h):
        b, d0 = x.shape
        hdim = self.rnn_hidden_dim
        bp = _pad_up(b, _SUBLANE)
        d0p = _pad_up(d0, _LANE)
        hp = self._hp
        xp = jnp.pad(x.astype(jnp.float32), ((0, bp - b), (0, d0p - d0)))
        h_in = jnp.pad(h.astype(jnp.float32), ((0, bp - b), (0, hp - hdim)))
        out_p = _pad_up(self._out_dim, _LANE)
        vmem = pl.BlockSpec(memory_space=pltpu.MemorySpace.VMEM)
        logits, new_h = pl.pallas_call(
            _make_rnn_kernel(self._n_before, self._n_after, hp),
            out_shape=(jax.ShapeDtypeStruct((bp, out_p), jnp.float32),
                       jax.ShapeDtypeStruct((bp, hp), jnp.float32)),
            in_specs=[vmem] * (2 + len(params)),
            out_specs=(vmem, vmem),
        )(xp, h_in, *params)
        return logits[:b, :self._out_dim], new_h[:b, :hdim]

    def forward(self, activations, hidden_state=None):
        if hidden_state is None:
            logits = self._mlp_fwd(self.params, activations)
            return logits, None
        logits, new_h = self._rnn_fwd(self.params, activations, hidden_state)
        return logits, new_h

    __call__ = forward


# ----------------------------------------------------------------------------
# Pure-JAX references (for correctness check of the fused kernels)
# ----------------------------------------------------------------------------
def _reference_mlp(actor, x):
    b, d0 = x.shape
    act = jnp.pad(x, ((0, _pad_up(b, _SUBLANE) - b), (0, _pad_up(d0, _LANE) - d0)))
    params = list(actor.params)
    for li in range(actor._n_layers):
        w, bias = params[2 * li], params[2 * li + 1]
        act = act @ w + bias
        if li < actor._n_layers - 1:
            act = jnp.maximum(act, 0.0)
    return act[:b, :actor._out_dim]


def _reference_rnn(actor, x, h):
    b, d0 = x.shape
    hp = actor._hp
    hdim = actor.rnn_hidden_dim
    act = jnp.pad(x, ((0, _pad_up(b, _SUBLANE) - b), (0, _pad_up(d0, _LANE) - d0)))
    hpad = jnp.pad(h, ((0, _pad_up(b, _SUBLANE) - b), (0, hp - hdim)))
    params = list(actor.params)
    idx = 0
    for _ in range(actor._n_before):
        w, bias = params[idx], params[idx + 1]
        idx += 2
        act = jnp.maximum(act @ w + bias, 0.0)
    wih, whh, bih, bhh = params[idx:idx + 4]
    idx += 4
    gi = act @ wih + bih
    gh = hpad @ whh + bhh
    r = jax.nn.sigmoid(gi[:, :hp] + gh[:, :hp])
    z = jax.nn.sigmoid(gi[:, hp:2 * hp] + gh[:, hp:2 * hp])
    n = jnp.tanh(gi[:, 2 * hp:] + r * gh[:, 2 * hp:])
    hnew = (1.0 - z) * n + z * hpad
    act = hnew
    for li in range(actor._n_after):
        w, bias = params[idx], params[idx + 1]
        idx += 2
        act = act @ w + bias
        if li < actor._n_after - 1:
            act = jnp.maximum(act, 0.0)
    return act[:b, :actor._out_dim], hnew[:b, :hdim]


# ----------------------------------------------------------------------------
# Main
# ----------------------------------------------------------------------------
if __name__ == "__main__":
    key = jax.random.PRNGKey(0)
    k_in, k_h, k_m1, k_m2 = jax.random.split(key, 4)

    batch = 2
    obs_dim = 16
    hidden = 32
    n_actions = 8

    x = jax.random.normal(k_in, (batch, obs_dim), jnp.float32)
    h0 = jax.random.normal(k_h, (batch, hidden), jnp.float32)

    # --- RNN variant: before=[16,32], GRUCell(32->32), after=[32,8] ---
    actor_rnn = Actor(before_rnn_layers=[obs_dim, 32],
                      after_rnn_layers=[32, n_actions],
                      rnn_hidden_dim=hidden,
                      key=k_m1)
    logits_rnn, new_h = actor_rnn(x, h0)
    logits_rnn = jax.block_until_ready(logits_rnn)
    new_h = jax.block_until_ready(new_h)
    assert logits_rnn.shape == (batch, n_actions)
    assert new_h.shape == (batch, hidden)

    ref_logits, ref_h = _reference_rnn(actor_rnn, x, h0)
    np.testing.assert_allclose(np.asarray(logits_rnn), np.asarray(ref_logits),
                               atol=2e-2, rtol=2e-2)
    np.testing.assert_allclose(np.asarray(new_h), np.asarray(ref_h),
                               atol=2e-2, rtol=2e-2)

    # --- pure-MLP variant: fc_layers = [16, 32, 32, 8] ---
    actor_mlp = Actor(before_rnn_layers=[obs_dim, 32],
                      after_rnn_layers=[32, n_actions],
                      rnn_hidden_dim=0,
                      key=k_m2)
    logits_mlp, none_h = actor_mlp(x, None)
    logits_mlp = jax.block_until_ready(logits_mlp)
    assert logits_mlp.shape == (batch, n_actions)
    assert none_h is None

    ref_mlp = _reference_mlp(actor_mlp, x)
    np.testing.assert_allclose(np.asarray(logits_mlp), np.asarray(ref_mlp),
                               atol=2e-2, rtol=2e-2)

    print("KERNEL_OK")
</pallas_src>

<mosaic_0001>
module attributes {stable_mosaic.version = 11 : i64} {
  func.func @kernel(%arg0: memref<8x128xf32, #tpu.memory_space<vmem>>, %arg1: memref<8x128xf32, #tpu.memory_space<vmem>>, %arg2: memref<128x128xf32, #tpu.memory_space<vmem>>, %arg3: memref<1x128xf32, #tpu.memory_space<vmem>>, %arg4: memref<128x384xf32, #tpu.memory_space<vmem>>, %arg5: memref<128x384xf32, #tpu.memory_space<vmem>>, %arg6: memref<1x384xf32, #tpu.memory_space<vmem>>, %arg7: memref<1x384xf32, #tpu.memory_space<vmem>>, %arg8: memref<128x128xf32, #tpu.memory_space<vmem>>, %arg9: memref<1x128xf32, #tpu.memory_space<vmem>>, %arg10: memref<128x128xf32, #tpu.memory_space<vmem>>, %arg11: memref<1x128xf32, #tpu.memory_space<vmem>>, %arg12: memref<8x128xf32, #tpu.memory_space<vmem>>, %arg13: memref<8x128xf32, #tpu.memory_space<vmem>>) attributes {dimension_semantics = [], scalar_prefetch = 0 : i64, scratch_operands = 0 : i64, tpu.core_type = #tpu.core_type<tc>} {
    %c0 = arith.constant 0 : index
    %c0_0 = arith.constant 0 : index
    %0 = vector.load %arg0[%c0, %c0_0] : memref<8x128xf32, #tpu.memory_space<vmem>>, vector<8x128xf32>
    %c0_1 = arith.constant 0 : index
    %c0_2 = arith.constant 0 : index
    %1 = vector.load %arg2[%c0_1, %c0_2] : memref<128x128xf32, #tpu.memory_space<vmem>>, vector<128x128xf32>
    %cst = arith.constant dense<0.000000e+00> : vector<8x128xf32>
    %2 = tpu.matmul %0, %1, %cst {dimension_numbers = #tpu.dot_dimension_numbers<[1], [0], [0], [1], [0, 0, 1, 1], [], []>} : vector<8x128xf32>, vector<128x128xf32>, vector<8x128xf32> -> vector<8x128xf32>
    %c0_3 = arith.constant 0 : index
    %c0_4 = arith.constant 0 : index
    %3 = vector.load %arg3[%c0_3, %c0_4] : memref<1x128xf32, #tpu.memory_space<vmem>>, vector<1x128xf32>
    %4 = vector.broadcast %3 : vector<1x128xf32> to vector<8x128xf32>
    %5 = arith.addf %2, %4 : vector<8x128xf32>
    %cst_5 = arith.constant 0.000000e+00 : f32
    %6 = vector.broadcast %cst_5 : f32 to vector<8x128xf32>
    %7 = arith.maximumf %5, %6 : vector<8x128xf32>
    %c0_6 = arith.constant 0 : index
    %c0_7 = arith.constant 0 : index
    %8 = vector.load %arg1[%c0_6, %c0_7] : memref<8x128xf32, #tpu.memory_space<vmem>>, vector<8x128xf32>
    %c0_8 = arith.constant 0 : index
    %c0_9 = arith.constant 0 : index
    %9 = vector.load %arg4[%c0_8, %c0_9] : memref<128x384xf32, #tpu.memory_space<vmem>>, vector<128x384xf32>
    %cst_10 = arith.constant dense<0.000000e+00> : vector<8x384xf32>
    %10 = tpu.matmul %7, %9, %cst_10 {dimension_numbers = #tpu.dot_dimension_numbers<[1], [0], [0], [1], [0, 0, 1, 1], [], []>} : vector<8x128xf32>, vector<128x384xf32>, vector<8x384xf32> -> vector<8x384xf32>
    %c0_11 = arith.constant 0 : index
    %c0_12 = arith.constant 0 : index
    %11 = vector.load %arg6[%c0_11, %c0_12] : memref<1x384xf32, #tpu.memory_space<vmem>>, vector<1x384xf32>
    %12 = vector.broadcast %11 : vector<1x384xf32> to vector<8x384xf32>
    %13 = arith.addf %10, %12 : vector<8x384xf32>
    %c0_13 = arith.constant 0 : index
    %c0_14 = arith.constant 0 : index
    %14 = vector.load %arg5[%c0_13, %c0_14] : memref<128x384xf32, #tpu.memory_space<vmem>>, vector<128x384xf32>
    %cst_15 = arith.constant dense<0.000000e+00> : vector<8x384xf32>
    %15 = tpu.matmul %8, %14, %cst_15 {dimension_numbers = #tpu.dot_dimension_numbers<[1], [0], [0], [1], [0, 0, 1, 1], [], []>} : vector<8x128xf32>, vector<128x384xf32>, vector<8x384xf32> -> vector<8x384xf32>
    %c0_16 = arith.constant 0 : index
    %c0_17 = arith.constant 0 : index
    %16 = vector.load %arg7[%c0_16, %c0_17] : memref<1x384xf32, #tpu.memory_space<vmem>>, vector<1x384xf32>
    %17 = vector.broadcast %16 : vector<1x384xf32> to vector<8x384xf32>
    %18 = arith.addf %15, %17 : vector<8x384xf32>
    %19 = vector.extract_strided_slice %13 {offsets = [0, 0], sizes = [8, 128], strides = [1, 1]} : vector<8x384xf32> to vector<8x128xf32>
    %20 = vector.extract_strided_slice %13 {offsets = [0, 128], sizes = [8, 128], strides = [1, 1]} : vector<8x384xf32> to vector<8x128xf32>
    %21 = vector.extract_strided_slice %13 {offsets = [0, 256], sizes = [8, 128], strides = [1, 1]} : vector<8x384xf32> to vector<8x128xf32>
    %22 = vector.extract_strided_slice %18 {offsets = [0, 0], sizes = [8, 128], strides = [1, 1]} : vector<8x384xf32> to vector<8x128xf32>
    %23 = vector.extract_strided_slice %18 {offsets = [0, 128], sizes = [8, 128], strides = [1, 1]} : vector<8x384xf32> to vector<8x128xf32>
    %24 = vector.extract_strided_slice %18 {offsets = [0, 256], sizes = [8, 128], strides = [1, 1]} : vector<8x384xf32> to vector<8x128xf32>
    %25 = arith.addf %19, %22 : vector<8x128xf32>
    %26 = arith.negf %25 : vector<8x128xf32>
    %27 = math.exp %26 : vector<8x128xf32>
    %cst_18 = arith.constant 1.000000e+00 : f32
    %28 = vector.broadcast %cst_18 : f32 to vector<8x128xf32>
    %29 = arith.addf %28, %27 : vector<8x128xf32>
    %30 = arith.divf %28, %29 : vector<8x128xf32>
    %31 = arith.addf %20, %23 : vector<8x128xf32>
    %32 = arith.negf %31 : vector<8x128xf32>
    %33 = math.exp %32 : vector<8x128xf32>
    %cst_19 = arith.constant 1.000000e+00 : f32
    %34 = vector.broadcast %cst_19 : f32 to vector<8x128xf32>
    %35 = arith.addf %34, %33 : vector<8x128xf32>
    %36 = arith.divf %34, %35 : vector<8x128xf32>
    %37 = arith.mulf %30, %24 : vector<8x128xf32>
    %38 = arith.addf %21, %37 : vector<8x128xf32>
    %39 = math.tanh %38 : vector<8x128xf32>
    %cst_20 = arith.constant 1.000000e+00 : f32
    %40 = vector.broadcast %cst_20 : f32 to vector<8x128xf32>
    %41 = arith.subf %40, %36 : vector<8x128xf32>
    %42 = arith.mulf %41, %39 : vector<8x128xf32>
    %43 = arith.mulf %36, %8 : vector<8x128xf32>
    %44 = arith.addf %42, %43 : vector<8x128xf32>
    %c0_21 = arith.constant 0 : index
    %c0_22 = arith.constant 0 : index
    %45 = vector.load %arg13[%c0_21, %c0_22] : memref<8x128xf32, #tpu.memory_space<vmem>>, vector<8x128xf32>
    tpu.vector_store %arg13[%c0_21, %c0_22], %44 {strides = array<i32>} : memref<8x128xf32, #tpu.memory_space<vmem>>, vector<8x128xf32>,
    %c0_23 = arith.constant 0 : index
    %c0_24 = arith.constant 0 : index
    %46 = vector.load %arg8[%c0_23, %c0_24] : memref<128x128xf32, #tpu.memory_space<vmem>>, vector<128x128xf32>
    %cst_25 = arith.constant dense<0.000000e+00> : vector<8x128xf32>
    %47 = tpu.matmul %44, %46, %cst_25 {dimension_numbers = #tpu.dot_dimension_numbers<[1], [0], [0], [1], [0, 0, 1, 1], [], []>} : vector<8x128xf32>, vector<128x128xf32>, vector<8x128xf32> -> vector<8x128xf32>
    %c0_26 = arith.constant 0 : index
    %c0_27 = arith.constant 0 : index
    %48 = vector.load %arg9[%c0_26, %c0_27] : memref<1x128xf32, #tpu.memory_space<vmem>>, vector<1x128xf32>
    %49 = vector.broadcast %48 : vector<1x128xf32> to vector<8x128xf32>
    %50 = arith.addf %47, %49 : vector<8x128xf32>
    %cst_28 = arith.constant 0.000000e+00 : f32
    %51 = vector.broadcast %cst_28 : f32 to vector<8x128xf32>
    %52 = arith.maximumf %50, %51 : vector<8x128xf32>
    %c0_29 = arith.constant 0 : index
    %c0_30 = arith.constant 0 : index
    %53 = vector.load %arg10[%c0_29, %c0_30] : memref<128x128xf32, #tpu.memory_space<vmem>>, vector<128x128xf32>
    %cst_31 = arith.constant dense<0.000000e+00> : vector<8x128xf32>
    %54 = tpu.matmul %52, %53, %cst_31 {dimension_numbers = #tpu.dot_dimension_numbers<[1], [0], [0], [1], [0, 0, 1, 1], [], []>} : vector<8x128xf32>, vector<128x128xf32>, vector<8x128xf32> -> vector<8x128xf32>
    %c0_32 = arith.constant 0 : index
    %c0_33 = arith.constant 0 : index
    %55 = vector.load %arg11[%c0_32, %c0_33] : memref<1x128xf32, #tpu.memory_space<vmem>>, vector<1x128xf32>
    %56 = vector.broadcast %55 : vector<1x128xf32> to vector<8x128xf32>
    %57 = arith.addf %54, %56 : vector<8x128xf32>
    %c0_34 = arith.constant 0 : index
    %c0_35 = arith.constant 0 : index
    %58 = vector.load %arg12[%c0_34, %c0_35] : memref<8x128xf32, #tpu.memory_space<vmem>>, vector<8x128xf32>
    tpu.vector_store %arg12[%c0_34, %c0_35], %57 {strides = array<i32>} : memref<8x128xf32, #tpu.memory_space<vmem>>, vector<8x128xf32>,
    return
  }
}

</mosaic_0001>

<llo_original>
// kernel: _rnn_impl.1
$region0: #{_rnn_impl.1}
  #allocation0 [shape = 'u32[]', space=smem, size = 0x4, offset = 0x4, fixed_abs, tag = 'smem constant byte address 0x4 - core index']
  #allocation1 [shape = 'u32[72,128]{1,0:T(1,128)}', space=vmem, size = 0x9000, scoped, tag = 'internal scratch']
  %s0 = inlined_call_operand.vmem [shape: f32[8,128], index: 0, kind: input, shape index: {}]
  %s1 = inlined_call_operand.vmem [shape: f32[8,128], index: 1, kind: input, shape index: {}]
  %s2 = inlined_call_operand.hbm [shape: f32[128,128], index: 2, kind: input, shape index: {}]
  %s3 = inlined_call_operand.vmem [shape: f32[1,128], index: 3, kind: input, shape index: {}]
  %s4 = inlined_call_operand.hbm [shape: f32[128,384], index: 4, kind: input, shape index: {}]
  %s5 = inlined_call_operand.hbm [shape: f32[128,384], index: 5, kind: input, shape index: {}]
  %s6 = inlined_call_operand.vmem [shape: f32[1,384], index: 6, kind: input, shape index: {}]
  %s7 = inlined_call_operand.vmem [shape: f32[1,384], index: 7, kind: input, shape index: {}]
  %s8 = inlined_call_operand.hbm [shape: f32[128,128], index: 8, kind: input, shape index: {}]
  %s9 = inlined_call_operand.vmem [shape: f32[1,128], index: 9, kind: input, shape index: {}]
  %s10 = inlined_call_operand.hbm [shape: f32[128,128], index: 10, kind: input, shape index: {}]
  %s11 = inlined_call_operand.vmem [shape: f32[1,128], index: 11, kind: input, shape index: {}]
  %s12 = inlined_call_operand.vmem [shape: f32[8,128], index: 12, kind: output, shape index: {0}]
  %s13 = inlined_call_operand.vmem [shape: f32[8,128], index: 13, kind: output, shape index: {1}]
  %14 = xla_tuple %s12, %s13
  %s15 = sld [smem:[#allocation0]]
  $region86: #{_rnn_impl.1} parent=0
    _
  %s17 = ssub.s32 1, %s15
  %s18 = scalar_select 0, %s17, %s15
  $region1: #{_rnn_impl.1} parent=0
    #allocation2 [shape = 'u8[65536]{0}', space=vmem, size = 0x10000, scoped, tag = 'input window, operand 2, single buffered']
    #allocation3 [shape = 's32[1]{0}', space=sflag, size = 0x4, scoped, tag = 'scoped memory for _rnn_impl.1']
    #allocation4 [shape = 'u8[196608]{0}', space=vmem, size = 0x30000, scoped, tag = 'input window, operand 4, single buffered']
    #allocation5 [shape = 's32[1]{0}', space=sflag, size = 0x4, scoped, tag = 'scoped memory for _rnn_impl.1']
    #allocation6 [shape = 'u8[196608]{0}', space=vmem, size = 0x30000, scoped, tag = 'input window, operand 5, single buffered']
    #allocation7 [shape = 'u8[65536]{0}', space=vmem, size = 0x10000, scoped, tag = 'input window, operand 8, single buffered']
    #allocation8 [shape = 's32[1]{0}', space=sflag, size = 0x4, scoped, tag = 'scoped memory for _rnn_impl.1']
    #allocation9 [shape = 'u8[65536]{0}', space=vmem, size = 0x10000, scoped, tag = 'input window, operand 10, single buffered']
    %19 = vsyncpa [#allocation3], 0
    %20 = vsyncpa [#allocation5], 0
    %21 = vsyncpa [#allocation8], 0
    // Predicated region
    $region2: #{_rnn_impl.1} parent=1 // pred_check
      _
    $region3: #{_rnn_impl.1} parent=1 // pred_check_branch
      %23 = sbr.rel (0) target = $region5
    $region4: #{_rnn_impl.1} parent=1 // pred_region
      _
    $region5: #{_rnn_impl.1} parent=1 // pred_fallthru
      _
    // Predicated region
    $region6: #{_rnn_impl.1} parent=1 // pred_check
      _
    $region7: #{_rnn_impl.1} parent=1 // pred_check_branch
      %25 = sbr.rel (0) target = $region9
    $region8: #{_rnn_impl.1} parent=1 // pred_region
      _
    $region9: #{_rnn_impl.1} parent=1 // pred_fallthru
      _
    // Predicated region
    $region10: #{_rnn_impl.1} parent=1 // pred_check
      _
    $region11: #{_rnn_impl.1} parent=1 // pred_check_branch
      %27 = sbr.rel (0) target = $region13
    $region12: #{_rnn_impl.1} parent=1 // pred_region
      %29 = vsyncadd [#allocation3], 0
      %s30 = sshll.u32 %s2, 4
      %s31 = int_to_ptr.hbm [resolvable:$true] %s30
      %s32 = sshll.u32 [#allocation2], 4
      %s33 = int_to_ptr.vmem [resolvable:$true] %s32
      %38 = dma.hbm_to_vmem [thread:$0]  %s31, 2048, %s33, [#allocation3], 128, 128, 8
    $region13: #{_rnn_impl.1} parent=1 // pred_fallthru
      _
    // Predicated region
    $region14: #{_rnn_impl.1} parent=1 // pred_check
      _
    $region15: #{_rnn_impl.1} parent=1 // pred_check_branch
      %40 = sbr.rel (0) target = $region17
    $region16: #{_rnn_impl.1} parent=1 // pred_region
      _
    $region17: #{_rnn_impl.1} parent=1 // pred_fallthru
      _
    // Predicated region
    $region18: #{_rnn_impl.1} parent=1 // pred_check
      _
    $region19: #{_rnn_impl.1} parent=1 // pred_check_branch
      %42 = sbr.rel (0) target = $region21
    $region20: #{_rnn_impl.1} parent=1 // pred_region
      %44 = vsyncadd [#allocation5], 0
      %s45 = sshll.u32 %s4, 4
      %s46 = int_to_ptr.hbm [resolvable:$true] %s45
      %s47 = sshll.u32 [#allocation4], 4
      %s48 = int_to_ptr.vmem [resolvable:$true] %s47
      %53 = dma.hbm_to_vmem [thread:$0]  %s46, 6144, %s48, [#allocation5], 384, 384, 24
    $region21: #{_rnn_impl.1} parent=1 // pred_fallthru
      _
    // Predicated region
    $region22: #{_rnn_impl.1} parent=1 // pred_check
      _
    $region23: #{_rnn_impl.1} parent=1 // pred_check_branch
      %55 = sbr.rel (0) target = $region25
    $region24: #{_rnn_impl.1} parent=1 // pred_region
      %57 = vsyncadd [#allocation5], 0
      %s58 = sshll.u32 %s5, 4
      %s59 = int_to_ptr.hbm [resolvable:$true] %s58
      %s60 = sshll.u32 [#allocation6], 4
      %s61 = int_to_ptr.vmem [resolvable:$true] %s60
      %66 = dma.hbm_to_vmem [thread:$0]  %s59, 6144, %s61, [#allocation5], 384, 384, 24
    $region25: #{_rnn_impl.1} parent=1 // pred_fallthru
      _
    // Predicated region
    $region26: #{_rnn_impl.1} parent=1 // pred_check
      _
    $region27: #{_rnn_impl.1} parent=1 // pred_check_branch
      %68 = sbr.rel (0) target = $region29
    $region28: #{_rnn_impl.1} parent=1 // pred_region
      _
    $region29: #{_rnn_impl.1} parent=1 // pred_fallthru
      _
    // Predicated region
    $region30: #{_rnn_impl.1} parent=1 // pred_check
      _
    $region31: #{_rnn_impl.1} parent=1 // pred_check_branch
      %70 = sbr.rel (0) target = $region33
    $region32: #{_rnn_impl.1} parent=1 // pred_region
      _
    $region33: #{_rnn_impl.1} parent=1 // pred_fallthru
      _
    // Predicated region
    $region34: #{_rnn_impl.1} parent=1 // pred_check
      _
    $region35: #{_rnn_impl.1} parent=1 // pred_check_branch
      %72 = sbr.rel (0) target = $region37
    $region36: #{_rnn_impl.1} parent=1 // pred_region
      %74 = vsyncadd [#allocation8], 0
      %s75 = sshll.u32 %s8, 4
      %s76 = int_to_ptr.hbm [resolvable:$true] %s75
      %s77 = sshll.u32 [#allocation7], 4
      %s78 = int_to_ptr.vmem [resolvable:$true] %s77
      %83 = dma.hbm_to_vmem [thread:$0]  %s76, 2048, %s78, [#allocation8], 128, 128, 8
    $region37: #{_rnn_impl.1} parent=1 // pred_fallthru
      _
    // Predicated region
    $region38: #{_rnn_impl.1} parent=1 // pred_check
      _
    $region39: #{_rnn_impl.1} parent=1 // pred_check_branch
      %85 = sbr.rel (0) target = $region41
    $region40: #{_rnn_impl.1} parent=1 // pred_region
      _
    $region41: #{_rnn_impl.1} parent=1 // pred_fallthru
      _
    // Predicated region
    $region42: #{_rnn_impl.1} parent=1 // pred_check
      _
    $region43: #{_rnn_impl.1} parent=1 // pred_check_branch
      %87 = sbr.rel (0) target = $region45
    $region44: #{_rnn_impl.1} parent=1 // pred_region
      %89 = vsyncadd [#allocation8], 0
      %s90 = sshll.u32 %s10, 4
      %s91 = int_to_ptr.hbm [resolvable:$true] %s90
      %s92 = sshll.u32 [#allocation9], 4
      %s93 = int_to_ptr.vmem [resolvable:$true] %s92
      %98 = dma.hbm_to_vmem [thread:$0]  %s91, 2048, %s93, [#allocation8], 128, 128, 8
    $region45: #{_rnn_impl.1} parent=1 // pred_fallthru
      _
    // Predicated region
    $region46: #{_rnn_impl.1} parent=1 // pred_check
      _
    $region47: #{_rnn_impl.1} parent=1 // pred_check_branch
      %100 = sbr.rel (0) target = $region49
    $region48: #{_rnn_impl.1} parent=1 // pred_region
      _
    $region49: #{_rnn_impl.1} parent=1 // pred_fallthru
      _
    // Predicated region
    $region50: #{_rnn_impl.1} parent=1 // pred_check
      _
    $region51: #{_rnn_impl.1} parent=1 // pred_check_branch
      %102 = sbr.rel (0) target = $region53
    $region52: #{_rnn_impl.1} parent=1 // pred_region
      %104 = dma.done [#allocation3], 2048
    $region53: #{_rnn_impl.1} parent=1 // pred_fallthru
      _
    // Predicated region
    $region54: #{_rnn_impl.1} parent=1 // pred_check
      _
    $region55: #{_rnn_impl.1} parent=1 // pred_check_branch
      %106 = sbr.rel (0) target = $region57
    $region56: #{_rnn_impl.1} parent=1 // pred_region
      %108 = dma.done [#allocation5], 6144
    $region57: #{_rnn_impl.1} parent=1 // pred_fallthru
      _
    // Predicated region
    $region58: #{_rnn_impl.1} parent=1 // pred_check
      _
    $region59: #{_rnn_impl.1} parent=1 // pred_check_branch
      %110 = sbr.rel (0) target = $region61
    $region60: #{_rnn_impl.1} parent=1 // pred_region
      %112 = dma.done [#allocation5], 6144
    $region61: #{_rnn_impl.1} parent=1 // pred_fallthru
      _
    // Predicated region
    $region62: #{_rnn_impl.1} parent=1 // pred_check
      _
    $region63: #{_rnn_impl.1} parent=1 // pred_check_branch
      %114 = sbr.rel (0) target = $region65
    $region64: #{_rnn_impl.1} parent=1 // pred_region
      %116 = dma.done [#allocation8], 2048
    $region65: #{_rnn_impl.1} parent=1 // pred_fallthru
      _
    // Predicated region
    $region66: #{_rnn_impl.1} parent=1 // pred_check
      _
    $region67: #{_rnn_impl.1} parent=1 // pred_check_branch
      %118 = sbr.rel (0) target = $region69
    $region68: #{_rnn_impl.1} parent=1 // pred_region
      %120 = dma.done [#allocation8], 2048
    $region69: #{_rnn_impl.1} parent=1 // pred_fallthru
      _
    %v121 = vld [vmem:[%s0] sm:$0xff]
    %v122 = vld [vmem:[#allocation2] sm:$0xff]
    %v123 = vld [vmem:[#allocation2 + $0x8] sm:$0xff]
    %v124 = vld [vmem:[#allocation2 + $0x10] sm:$0xff]
    %v125 = vld [vmem:[#allocation2 + $0x18] sm:$0xff]
    %v126 = vld [vmem:[#allocation2 + $0x20] sm:$0xff]
    %v127 = vld [vmem:[#allocation2 + $0x28] sm:$0xff]
    %v128 = vld [vmem:[#allocation2 + $0x30] sm:$0xff]
    %v129 = vld [vmem:[#allocation2 + $0x38] sm:$0xff]
    %v130 = vld [vmem:[#allocation2 + $0x40] sm:$0xff]
    %v131 = vld [vmem:[#allocation2 + $0x48] sm:$0xff]
    %v132 = vld [vmem:[#allocation2 + $0x50] sm:$0xff]
    %v133 = vld [vmem:[#allocation2 + $0x58] sm:$0xff]
    %v134 = vld [vmem:[#allocation2 + $0x60] sm:$0xff]
    %v135 = vld [vmem:[#allocation2 + $0x68] sm:$0xff]
    %v136 = vld [vmem:[#allocation2 + $0x70] sm:$0xff]
    %v137 = vld [vmem:[#allocation2 + $0x78] sm:$0xff]
    %v138 = vld [vmem:[%s3] sm:$0x1]
    %v140 = vperm.slane %v138, 0
    %142 = vmatpush.msra.mxu0 %v137
    %143 = vmatpush.msra.mxu0 %v136
    %144 = vmatpush.msra.mxu0 %v135
    %145 = vmatpush.msra.mxu0 %v134
    %146 = vmatpush.msra.mxu0 %v133
    %147 = vmatpush.msra.mxu0 %v132
    %148 = vmatpush.msra.mxu0 %v131
    %149 = vmatpush.msra.mxu0 %v130
    %150 = vmatpush.msra.mxu0 %v129
    %151 = vmatpush.msra.mxu0 %v128
    %152 = vmatpush.msra.mxu0 %v127
    %153 = vmatpush.msra.mxu0 %v126
    %154 = vmatpush.msra.mxu0 %v125
    %155 = vmatpush.msra.mxu0 %v124
    %156 = vmatpush.msra.mxu0 %v123
    %157 = vmatpush.msra.mxu0 %v122
    %158 = vmatmul.f32.gmra.mxu0 %v121
    %v159 = vpop.f32.mrf.mxu0
    %v160 = vadd.f32 %v140, %v159
    %161 = vdwg.mxu0
    %v162 = vmax.f32 %v160, 0.0
    %v163 = vld [vmem:[%s1] sm:$0xff]
    %v164 = vld [vmem:[#allocation4] sm:$0xff]
    %v165 = vld [vmem:[#allocation4 + $0x8] sm:$0xff]
    %v166 = vld [vmem:[#allocation4 + $0x10] sm:$0xff]
    %v167 = vld [vmem:[#allocation4 + $0x18] sm:$0xff]
    %v168 = vld [vmem:[#allocation4 + $0x20] sm:$0xff]
    %v169 = vld [vmem:[#allocation4 + $0x28] sm:$0xff]
    %v170 = vld [vmem:[#allocation4 + $0x30] sm:$0xff]
    %v171 = vld [vmem:[#allocation4 + $0x38] sm:$0xff]
    %v172 = vld [vmem:[#allocation4 + $0x40] sm:$0xff]
    %v173 = vld [vmem:[#allocation4 + $0x48] sm:$0xff]
    %v174 = vld [vmem:[#allocation4 + $0x50] sm:$0xff]
    %v175 = vld [vmem:[#allocation4 + $0x58] sm:$0xff]
    %v176 = vld [vmem:[#allocation4 + $0x60] sm:$0xff]
    %v177 = vld [vmem:[#allocation4 + $0x68] sm:$0xff]
    %v178 = vld [vmem:[#allocation4 + $0x70] sm:$0xff]
    %v179 = vld [vmem:[#allocation4 + $0x78] sm:$0xff]
    %v180 = vld [vmem:[#allocation4 + $0x80] sm:$0xff]
    %v181 = vld [vmem:[#allocation4 + $0x88] sm:$0xff]
    %v182 = vld [vmem:[#allocation4 + $0x90] sm:$0xff]
    %v183 = vld [vmem:[#allocation4 + $0x98] sm:$0xff]
    %v184 = vld [vmem:[#allocation4 + $0xa0] sm:$0xff]
    %v185 = vld [vmem:[#allocation4 + $0xa8] sm:$0xff]
    %v186 = vld [vmem:[#allocation4 + $0xb0] sm:$0xff]
    %v187 = vld [vmem:[#allocation4 + $0xb8] sm:$0xff]
    %v188 = vld [vmem:[#allocation4 + $0xc0] sm:$0xff]
    %v189 = vld [vmem:[#allocation4 + $0xc8] sm:$0xff]
    %v190 = vld [vmem:[#allocation4 + $0xd0] sm:$0xff]
    %v191 = vld [vmem:[#allocation4 + $0xd8] sm:$0xff]
    %v192 = vld [vmem:[#allocation4 + $0xe0] sm:$0xff]
    %v193 = vld [vmem:[#allocation4 + $0xe8] sm:$0xff]
    %v194 = vld [vmem:[#allocation4 + $0xf0] sm:$0xff]
    %v195 = vld [vmem:[#allocation4 + $0xf8] sm:$0xff]
    %v196 = vld [vmem:[#allocation4 + $0x100] sm:$0xff]
    %v197 = vld [vmem:[#allocation4 + $0x108] sm:$0xff]
    %v198 = vld [vmem:[#allocation4 + $0x110] sm:$0xff]
    %v199 = vld [vmem:[#allocation4 + $0x118] sm:$0xff]
    %v200 = vld [vmem:[#allocation4 + $0x120] sm:$0xff]
    %v201 = vld [vmem:[#allocation4 + $0x128] sm:$0xff]
    %v202 = vld [vmem:[#allocation4 + $0x130] sm:$0xff]
    %v203 = vld [vmem:[#allocation4 + $0x138] sm:$0xff]
    %v204 = vld [vmem:[#allocation4 + $0x140] sm:$0xff]
    %v205 = vld [vmem:[#allocation4 + $0x148] sm:$0xff]
    %v206 = vld [vmem:[#allocation4 + $0x150] sm:$0xff]
    %v207 = vld [vmem:[#allocation4 + $0x158] sm:$0xff]
    %v208 = vld [vmem:[#allocation4 + $0x160] sm:$0xff]
    %v209 = vld [vmem:[#allocation4 + $0x168] sm:$0xff]
    %v210 = vld [vmem:[#allocation4 + $0x170] sm:$0xff]
    %v211 = vld [vmem:[#allocation4 + $0x178] sm:$0xff]
    %v212 = vld [vmem:[%s6] sm:$0x7]
    %v214 = vperm.slane %v212, 0
    %v215 = vperm.slane %v212, 1
    %v216 = vperm.slane %v212, 2
    %220 = vmatpush.msra.mxu0 %v209
    %221 = vmatpush.msra.mxu0 %v206
    %222 = vmatpush.msra.mxu0 %v203
    %223 = vmatpush.msra.mxu0 %v200
    %224 = vmatpush.msra.mxu0 %v197
    %225 = vmatpush.msra.mxu0 %v194
    %226 = vmatpush.msra.mxu0 %v191
    %227 = vmatpush.msra.mxu0 %v188
    %228 = vmatpush.msra.mxu0 %v185
    %229 = vmatpush.msra.mxu0 %v182
    %230 = vmatpush.msra.mxu0 %v179
    %231 = vmatpush.msra.mxu0 %v176
    %232 = vmatpush.msra.mxu0 %v173
    %233 = vmatpush.msra.mxu0 %v170
    %234 = vmatpush.msra.mxu0 %v167
    %235 = vmatpush.msra.mxu0 %v164
    %236 = vmatmul.f32.gmra.mxu0 %v162
    %v237 = vpop.f32.mrf.mxu0
    %v238 = vadd.f32 %v214, %v237
    %239 = vdwg.mxu0
    %240 = vmatpush.msra.mxu0 %v210
    %241 = vmatpush.msra.mxu0 %v207
    %242 = vmatpush.msra.mxu0 %v204
    %243 = vmatpush.msra.mxu0 %v201
    %244 = vmatpush.msra.mxu0 %v198
    %245 = vmatpush.msra.mxu0 %v195
    %246 = vmatpush.msra.mxu0 %v192
    %247 = vmatpush.msra.mxu0 %v189
    %248 = vmatpush.msra.mxu0 %v186
    %249 = vmatpush.msra.mxu0 %v183
    %250 = vmatpush.msra.mxu0 %v180
    %251 = vmatpush.msra.mxu0 %v177
    %252 = vmatpush.msra.mxu0 %v174
    %253 = vmatpush.msra.mxu0 %v171
    %254 = vmatpush.msra.mxu0 %v168
    %255 = vmatpush.msra.mxu0 %v165
    %256 = vmatmul.f32.gmra.mxu0 %v162
    %v257 = vpop.f32.mrf.mxu0
    %v258 = vadd.f32 %v215, %v257
    %259 = vdwg.mxu0
    %260 = vmatpush.msra.mxu0 %v211
    %261 = vmatpush.msra.mxu0 %v208
    %262 = vmatpush.msra.mxu0 %v205
    %263 = vmatpush.msra.mxu0 %v202
    %264 = vmatpush.msra.mxu0 %v199
    %265 = vmatpush.msra.mxu0 %v196
    %266 = vmatpush.msra.mxu0 %v193
    %267 = vmatpush.msra.mxu0 %v190
    %268 = vmatpush.msra.mxu0 %v187
    %269 = vmatpush.msra.mxu0 %v184
    %270 = vmatpush.msra.mxu0 %v181
    %271 = vmatpush.msra.mxu0 %v178
    %272 = vmatpush.msra.mxu0 %v175
    %273 = vmatpush.msra.mxu0 %v172
    %274 = vmatpush.msra.mxu0 %v169
    %275 = vmatpush.msra.mxu0 %v166
    %276 = vmatmul.f32.gmra.mxu0 %v162
    %v277 = vpop.f32.mrf.mxu0
    %v278 = vadd.f32 %v216, %v277
    %279 = vdwg.mxu0
    %v280 = vld [vmem:[#allocation6] sm:$0xff]
    %v281 = vld [vmem:[#allocation6 + $0x8] sm:$0xff]
    %v282 = vld [vmem:[#allocation6 + $0x10] sm:$0xff]
    %v283 = vld [vmem:[#allocation6 + $0x18] sm:$0xff]
    %v284 = vld [vmem:[#allocation6 + $0x20] sm:$0xff]
    %v285 = vld [vmem:[#allocation6 + $0x28] sm:$0xff]
    %v286 = vld [vmem:[#allocation6 + $0x30] sm:$0xff]
    %v287 = vld [vmem:[#allocation6 + $0x38] sm:$0xff]
    %v288 = vld [vmem:[#allocation6 + $0x40] sm:$0xff]
    %v289 = vld [vmem:[#allocation6 + $0x48] sm:$0xff]
    %v290 = vld [vmem:[#allocation6 + $0x50] sm:$0xff]
    %v291 = vld [vmem:[#allocation6 + $0x58] sm:$0xff]
    %v292 = vld [vmem:[#allocation6 + $0x60] sm:$0xff]
    %v293 = vld [vmem:[#allocation6 + $0x68] sm:$0xff]
    %v294 = vld [vmem:[#allocation6 + $0x70] sm:$0xff]
    %v295 = vld [vmem:[#allocation6 + $0x78] sm:$0xff]
    %v296 = vld [vmem:[#allocation6 + $0x80] sm:$0xff]
    %v297 = vld [vmem:[#allocation6 + $0x88] sm:$0xff]
    %v298 = vld [vmem:[#allocation6 + $0x90] sm:$0xff]
    %v299 = vld [vmem:[#allocation6 + $0x98] sm:$0xff]
    %v300 = vld [vmem:[#allocation6 + $0xa0] sm:$0xff]
    %v301 = vld [vmem:[#allocation6 + $0xa8] sm:$0xff]
    %v302 = vld [vmem:[#allocation6 + $0xb0] sm:$0xff]
    %v303 = vld [vmem:[#allocation6 + $0xb8] sm:$0xff]
    %v304 = vld [vmem:[#allocation6 + $0xc0] sm:$0xff]
    %v305 = vld [vmem:[#allocation6 + $0xc8] sm:$0xff]
    %v306 = vld [vmem:[#allocation6 + $0xd0] sm:$0xff]
    %v307 = vld [vmem:[#allocation6 + $0xd8] sm:$0xff]
    %v308 = vld [vmem:[#allocation6 + $0xe0] sm:$0xff]
    %v309 = vld [vmem:[#allocation6 + $0xe8] sm:$0xff]
    %v310 = vld [vmem:[#allocation6 + $0xf0] sm:$0xff]
    %v311 = vld [vmem:[#allocation6 + $0xf8] sm:$0xff]
    %v312 = vld [vmem:[#allocation6 + $0x100] sm:$0xff]
    %v313 = vld [vmem:[#allocation6 + $0x108] sm:$0xff]
    %v314 = vld [vmem:[#allocation6 + $0x110] sm:$0xff]
    %v315 = vld [vmem:[#allocation6 + $0x118] sm:$0xff]
    %v316 = vld [vmem:[#allocation6 + $0x120] sm:$0xff]
    %v317 = vld [vmem:[#allocation6 + $0x128] sm:$0xff]
    %v318 = vld [vmem:[#allocation6 + $0x130] sm:$0xff]
    %v319 = vld [vmem:[#allocation6 + $0x138] sm:$0xff]
    %v320 = vld [vmem:[#allocation6 + $0x140] sm:$0xff]
    %v321 = vld [vmem:[#allocation6 + $0x148] sm:$0xff]
    %v322 = vld [vmem:[#allocation6 + $0x150] sm:$0xff]
    %v323 = vld [vmem:[#allocation6 + $0x158] sm:$0xff]
    %v324 = vld [vmem:[#allocation6 + $0x160] sm:$0xff]
    %v325 = vld [vmem:[#allocation6 + $0x168] sm:$0xff]
    %v326 = vld [vmem:[#allocation6 + $0x170] sm:$0xff]
    %v327 = vld [vmem:[#allocation6 + $0x178] sm:$0xff]
    %v328 = vld [vmem:[%s7] sm:$0x7]
    %v330 = vperm.slane %v328, 0
    %v331 = vperm.slane %v328, 1
    %v332 = vperm.slane %v328, 2
    %336 = vmatpush.msra.mxu0 %v325
    %337 = vmatpush.msra.mxu0 %v322
    %338 = vmatpush.msra.mxu0 %v319
    %339 = vmatpush.msra.mxu0 %v316
    %340 = vmatpush.msra.mxu0 %v313
    %341 = vmatpush.msra.mxu0 %v310
    %342 = vmatpush.msra.mxu0 %v307
    %343 = vmatpush.msra.mxu0 %v304
    %344 = vmatpush.msra.mxu0 %v301
    %345 = vmatpush.msra.mxu0 %v298
    %346 = vmatpush.msra.mxu0 %v295
    %347 = vmatpush.msra.mxu0 %v292
    %348 = vmatpush.msra.mxu0 %v289
    %349 = vmatpush.msra.mxu0 %v286
    %350 = vmatpush.msra.mxu0 %v283
    %351 = vmatpush.msra.mxu0 %v280
    %352 = vmatmul.f32.gmra.mxu0 %v163
    %v353 = vpop.f32.mrf.mxu0
    %v354 = vadd.f32 %v330, %v353
    %355 = vdwg.mxu0
    %356 = vmatpush.msra.mxu0 %v326
    %357 = vmatpush.msra.mxu0 %v323
    %358 = vmatpush.msra.mxu0 %v320
    %359 = vmatpush.msra.mxu0 %v317
    %360 = vmatpush.msra.mxu0 %v314
    %361 = vmatpush.msra.mxu0 %v311
    %362 = vmatpush.msra.mxu0 %v308
    %363 = vmatpush.msra.mxu0 %v305
    %364 = vmatpush.msra.mxu0 %v302
    %365 = vmatpush.msra.mxu0 %v299
    %366 = vmatpush.msra.mxu0 %v296
    %367 = vmatpush.msra.mxu0 %v293
    %368 = vmatpush.msra.mxu0 %v290
    %369 = vmatpush.msra.mxu0 %v287
    %370 = vmatpush.msra.mxu0 %v284
    %371 = vmatpush.msra.mxu0 %v281
    %372 = vmatmul.f32.gmra.mxu0 %v163
    %v373 = vpop.f32.mrf.mxu0
    %v374 = vadd.f32 %v331, %v373
    %375 = vdwg.mxu0
    %376 = vmatpush.msra.mxu0 %v327
    %377 = vmatpush.msra.mxu0 %v324
    %378 = vmatpush.msra.mxu0 %v321
    %379 = vmatpush.msra.mxu0 %v318
    %380 = vmatpush.msra.mxu0 %v315
    %381 = vmatpush.msra.mxu0 %v312
    %382 = vmatpush.msra.mxu0 %v309
    %383 = vmatpush.msra.mxu0 %v306
    %384 = vmatpush.msra.mxu0 %v303
    %385 = vmatpush.msra.mxu0 %v300
    %386 = vmatpush.msra.mxu0 %v297
    %387 = vmatpush.msra.mxu0 %v294
    %388 = vmatpush.msra.mxu0 %v291
    %389 = vmatpush.msra.mxu0 %v288
    %390 = vmatpush.msra.mxu0 %v285
    %391 = vmatpush.msra.mxu0 %v282
    %392 = vmatmul.f32.gmra.mxu0 %v163
    %v393 = vpop.f32.mrf.mxu0
    %v394 = vadd.f32 %v332, %v393
    %395 = vdwg.mxu0
    %v396 = vadd.f32 %v238, %v354
    %v397 = vxor.u32 %v396, 2147483648
    %v398 = vmul.f32 %v397, 1.442695
    %v399 = vpow.pop %v398
    %v400 = vadd.f32 %v399, 1.0
    %v401 = vrcp.pop %v400
    %v402 = vmul.f32 %v400, %v401
    %v403 = vsub.f32 1.0, %v402
    %v404 = vmul.f32 %v401, %v403
    %v405 = vadd.f32 %v401, %v404
    %vm406 = vweird.f32 %v400
    %vm407 = vweird.f32 %v401
    %vm408 = vmor %vm406, %vm407
    %v409 = vsel %vm408, %v401, %v405
    %v410 = vand.u32 2147483647, %v400
    %vm411 = vcmp.eq.f32.partialorder %v410, 8.507059e+37
    %v412 = vand.u32 %v400, 2147483648
    %v413 = vor.u32 1.1754944e-38, %v412
    %v414 = vsel %vm411, %v413, %v409
    %v415 = vmul.f32 1.0, %v414
    %v416 = vadd.f32 %v258, %v374
    %v417 = vxor.u32 %v416, 2147483648
    %v418 = vmul.f32 %v417, 1.442695
    %v419 = vpow.pop %v418
    %v420 = vadd.f32 %v419, 1.0
    %v421 = vrcp.pop %v420
    %v422 = vmul.f32 %v420, %v421
    %v423 = vsub.f32 1.0, %v422
    %v424 = vmul.f32 %v421, %v423
    %v425 = vadd.f32 %v421, %v424
    %vm426 = vweird.f32 %v420
    %vm427 = vweird.f32 %v421
    %vm428 = vmor %vm426, %vm427
    %v429 = vsel %vm428, %v421, %v425
    %v430 = vand.u32 2147483647, %v420
    %vm431 = vcmp.eq.f32.partialorder %v430, 8.507059e+37
    %v432 = vand.u32 %v420, 2147483648
    %v433 = vor.u32 1.1754944e-38, %v432
    %v434 = vsel %vm431, %v433, %v429
    %v435 = vmul.f32 1.0, %v434
    %v436 = vmul.f32 %v415, %v394
    %v437 = vadd.f32 %v278, %v436
    %v438 = vtanh.pop %v437
    %v439 = vsub.f32 1.0, %v435
    %v440 = vmul.f32 %v439, %v438
    %v441 = vmul.f32 %v435, %v163
    %v442 = vadd.f32 %v440, %v441
    %443 = vst [vmem:[%s13] sm:$0xff] %v442
    %v444 = vld [vmem:[#allocation7] sm:$0xff]
    %v445 = vld [vmem:[#allocation7 + $0x8] sm:$0xff]
    %v446 = vld [vmem:[#allocation7 + $0x10] sm:$0xff]
    %v447 = vld [vmem:[#allocation7 + $0x18] sm:$0xff]
    %v448 = vld [vmem:[#allocation7 + $0x20] sm:$0xff]
    %v449 = vld [vmem:[#allocation7 + $0x28] sm:$0xff]
    %v450 = vld [vmem:[#allocation7 + $0x30] sm:$0xff]
    %v451 = vld [vmem:[#allocation7 + $0x38] sm:$0xff]
    %v452 = vld [vmem:[#allocation7 + $0x40] sm:$0xff]
    %v453 = vld [vmem:[#allocation7 + $0x48] sm:$0xff]
    %v454 = vld [vmem:[#allocation7 + $0x50] sm:$0xff]
    %v455 = vld [vmem:[#allocation7 + $0x58] sm:$0xff]
    %v456 = vld [vmem:[#allocation7 + $0x60] sm:$0xff]
    %v457 = vld [vmem:[#allocation7 + $0x68] sm:$0xff]
    %v458 = vld [vmem:[#allocation7 + $0x70] sm:$0xff]
    %v459 = vld [vmem:[#allocation7 + $0x78] sm:$0xff]
    %v460 = vld [vmem:[%s9] sm:$0x1]
    %v462 = vperm.slane %v460, 0
    %464 = vmatpush.msra.mxu0 %v459
    %465 = vmatpush.msra.mxu0 %v458
    %466 = vmatpush.msra.mxu0 %v457
    %467 = vmatpush.msra.mxu0 %v456
    %468 = vmatpush.msra.mxu0 %v455
    %469 = vmatpush.msra.mxu0 %v454
    %470 = vmatpush.msra.mxu0 %v453
    %471 = vmatpush.msra.mxu0 %v452
    %472 = vmatpush.msra.mxu0 %v451
    %473 = vmatpush.msra.mxu0 %v450
    %474 = vmatpush.msra.mxu0 %v449
    %475 = vmatpush.msra.mxu0 %v448
    %476 = vmatpush.msra.mxu0 %v447
    %477 = vmatpush.msra.mxu0 %v446
    %478 = vmatpush.msra.mxu0 %v445
    %479 = vmatpush.msra.mxu0 %v444
    %480 = vmatmul.f32.gmra.mxu0 %v442
    %v481 = vpop.f32.mrf.mxu0
    %v482 = vadd.f32 %v462, %v481
    %483 = vdwg.mxu0
    %v484 = vmax.f32 %v482, 0.0
    %v485 = vld [vmem:[#allocation9] sm:$0xff]
    %v486 = vld [vmem:[#allocation9 + $0x8] sm:$0xff]
    %v487 = vld [vmem:[#allocation9 + $0x10] sm:$0xff]
    %v488 = vld [vmem:[#allocation9 + $0x18] sm:$0xff]
    %v489 = vld [vmem:[#allocation9 + $0x20] sm:$0xff]
    %v490 = vld [vmem:[#allocation9 + $0x28] sm:$0xff]
    %v491 = vld [vmem:[#allocation9 + $0x30] sm:$0xff]
    %v492 = vld [vmem:[#allocation9 + $0x38] sm:$0xff]
    %v493 = vld [vmem:[#allocation9 + $0x40] sm:$0xff]
    %v494 = vld [vmem:[#allocation9 + $0x48] sm:$0xff]
    %v495 = vld [vmem:[#allocation9 + $0x50] sm:$0xff]
    %v496 = vld [vmem:[#allocation9 + $0x58] sm:$0xff]
    %v497 = vld [vmem:[#allocation9 + $0x60] sm:$0xff]
    %v498 = vld [vmem:[#allocation9 + $0x68] sm:$0xff]
    %v499 = vld [vmem:[#allocation9 + $0x70] sm:$0xff]
    %v500 = vld [vmem:[#allocation9 + $0x78] sm:$0xff]
    %v501 = vld [vmem:[%s11] sm:$0x1]
    %v503 = vperm.slane %v501, 0
    %505 = vmatpush.msra.mxu0 %v500
    %506 = vmatpush.msra.mxu0 %v499
    %507 = vmatpush.msra.mxu0 %v498
    %508 = vmatpush.msra.mxu0 %v497
    %509 = vmatpush.msra.mxu0 %v496
    %510 = vmatpush.msra.mxu0 %v495
    %511 = vmatpush.msra.mxu0 %v494
    %512 = vmatpush.msra.mxu0 %v493
    %513 = vmatpush.msra.mxu0 %v492
    %514 = vmatpush.msra.mxu0 %v491
    %515 = vmatpush.msra.mxu0 %v490
    %516 = vmatpush.msra.mxu0 %v489
    %517 = vmatpush.msra.mxu0 %v488
    %518 = vmatpush.msra.mxu0 %v487
    %519 = vmatpush.msra.mxu0 %v486
    %520 = vmatpush.msra.mxu0 %v485
    %521 = vmatmul.f32.gmra.mxu0 %v484
    %v522 = vpop.f32.mrf.mxu0
    %v523 = vadd.f32 %v503, %v522
    %524 = vdwg.mxu0
    %525 = vst [vmem:[%s12] sm:$0xff] %v523
    // Predicated region
    $region70: #{_rnn_impl.1} parent=1 // pred_check
      _
    $region71: #{_rnn_impl.1} parent=1 // pred_check_branch
      %527 = sbr.rel (0) target = $region73
    $region72: #{_rnn_impl.1} parent=1 // pred_region
      _
    $region73: #{_rnn_impl.1} parent=1 // pred_fallthru
      _
    // Predicated region
    $region74: #{_rnn_impl.1} parent=1 // pred_check
      _
    $region75: #{_rnn_impl.1} parent=1 // pred_check_branch
      %529 = sbr.rel (0) target = $region77
    $region76: #{_rnn_impl.1} parent=1 // pred_region
      _
    $region77: #{_rnn_impl.1} parent=1 // pred_fallthru
      _
    // Predicated region
    $region78: #{_rnn_impl.1} parent=1 // pred_check
      _
    $region79: #{_rnn_impl.1} parent=1 // pred_check_branch
      %531 = sbr.rel (0) target = $region81
    $region80: #{_rnn_impl.1} parent=1 // pred_region
      _
    $region81: #{_rnn_impl.1} parent=1 // pred_fallthru
      _
    // Predicated region
    $region82: #{_rnn_impl.1} parent=1 // pred_check
      _
    $region83: #{_rnn_impl.1} parent=1 // pred_check_branch
      %533 = sbr.rel (0) target = $region85
    $region84: #{_rnn_impl.1} parent=1 // pred_region
      _
    $region85: #{_rnn_impl.1} parent=1 // pred_fallthru
      _
    %534 = vsyncpa [#allocation3], 1
    %535 = vsyncpa [#allocation5], 1
    %536 = vsyncpa [#allocation8], 1

</llo_original>
